<compile_context>
chip_gen: v7x
topology: tpu7x:2x2x1
jax: 0.10.0
libtpu: 0.0.40
codegen_flags: <defaults>
</compile_context>

<pallas_src>
import math

import jax
import jax.numpy as jnp
from jax import lax
from jax.experimental import pallas as pl
from jax.experimental.pallas import tpu as pltpu


def _round_up(x, m):
    return -(-x // m) * m


def _bisenet_output_kernel(xm_ref, xh_ref, w1_ref, bias_ref, w2_ref, o_ref):
    # xm_ref:   (Cin, L)          tile_h rows of the zero-padded activation,
    #                             width Wp, spatial flattened onto lanes
    # xh_ref:   (Cin, 8*Wp)       8-row halo: rows immediately below this tile
    # w1_ref:   (3, Cmid, 3*Cin)  per-dy weights, K = (dx, cin)   [Cin < 128]
    #        or (9, Cmid, Cin)    per-tap weights                 [Cin >= 128]
    # bias_ref: (Cmid, 1)         folded BN bias (f32)
    # w2_ref:   (Ncls, Cmid)      1x1 conv weights
    # o_ref:    (Ncls, L)         lane-dense, channels-first output tile
    _, L = xm_ref.shape
    Wp = xh_ref.shape[1] // 8
    per_tap = w1_ref.shape[0] == 9

    # (Cin, L + 8*Wp): main rows ++ halo rows, same flattened layout.
    window = jnp.concatenate([xm_ref[...], xh_ref[...]], axis=1)
    Lw = window.shape[1]

    if Wp % 128 == 0:
        # dy*Wp offsets are lane-aligned; the dx shifts become two XLU rolls of
        # the whole window (overlap the MXU), then every tap is an aligned slice.
        shifted = (window,
                   pltpu.roll(window, shift=Lw - 1, axis=1),
                   pltpu.roll(window, shift=Lw - 2, axis=1))

        def tap(dy, dx):
            return shifted[dx][:, dy * Wp: dy * Wp + L]
    else:
        def tap(dy, dx):
            off = dy * Wp + dx
            return window[:, off: off + L]

    # 3x3 conv as tap-accumulated MXU matmuls (f32 accumulation).  BN scale is
    # already folded into w1 by the wrapper.
    acc = None
    if per_tap:                          # 9 matmuls, K = Cin (Cin >= 128)
        for dy in range(3):
            for dx in range(3):
                part = jnp.dot(w1_ref[3 * dy + dx], tap(dy, dx),
                               preferred_element_type=jnp.float32)
                acc = part if acc is None else acc + part
    else:                                # 3 matmuls, K = 3*Cin (deep K, small Cin)
        for dy in range(3):
            patch = jnp.concatenate([tap(dy, dx) for dx in range(3)], axis=0)
            part = jnp.dot(w1_ref[dy], patch, preferred_element_type=jnp.float32)
            acc = part if acc is None else acc + part

    # Folded BatchNorm bias + ReLU: once per tile, f32, lane-broadcast.
    mid = jnp.maximum(acc + bias_ref[...], 0.0)

    # 1x1 conv: (Ncls, Cmid) x (Cmid, L) -> (Ncls, L); stays lane-dense.
    out = jnp.dot(w2_ref[...], mid.astype(w2_ref.dtype),
                  preferred_element_type=jnp.float32)
    o_ref[...] = out.astype(o_ref.dtype)


def _vmem_limit_bytes():
    """Scoped-VMEM limit derived from the actual generation (v7x: 64 MiB VMEM)."""
    phys = 64 * 1024 * 1024                 # conservative fallback (v7x-sized)
    try:
        phys = int(pltpu.get_tpu_info().vmem_capacity_bytes)
    except Exception:
        pass
    return int(min(phys * 3 // 4, 96 * 1024 * 1024))


def _pick_tile_h(h_rows, wp, n, cin, cmid, ncls, itemsize, budget):
    """Largest row tile whose per-step VMEM footprint fits `budget`.

    Prefers an even number of row tiles when N == 1 (v7x has 2 TensorCores)."""
    def footprint(th):
        l = th * wp
        lw = l + 8 * wp
        consts = 2 * (9 * cin * cmid + ncls * cmid) * itemsize + 2 * cmid * 4
        io = (2 * cin * l * itemsize            # main activation block (dbl-buffered)
              + 2 * cin * 8 * wp * itemsize     # halo block
              + 2 * ncls * l * 4)               # output block (f32)
        tmp = (cin * lw * itemsize                                   # window
               + (2 * cin * lw * itemsize if wp % 128 == 0 else 0)   # rolled copies
               + (cin if cin >= 128 else 3 * cin) * l * itemsize     # tap operand
               + cmid * l * 4 + cmid * l * itemsize + ncls * l * 4)  # acc/mid/out
        return io + consts + tmp

    cands = [t for t in range(8, h_rows + 1, 8) if h_rows % t == 0]
    fitting = [t for t in cands if footprint(t) <= budget] or [min(cands)]
    if n == 1:
        even = [t for t in fitting if (h_rows // t) % 2 == 0]
        if even:
            return max(even)
    return max(fitting)


def bisenet_output_pallas(x_nchw, w1, bn_gamma, bn_beta, bn_mean, bn_var, w2,
                          eps=1e-5, compute_dtype=jnp.bfloat16, tile_h=None):
    """BiSeNetOutput forward (inference).

    x_nchw: (N, Cin, H, W);  w1: (Cmid, Cin, 3, 3);  w2: (Ncls, Cmid, 1, 1).
    Returns (N, Ncls, H, W) float32 in NCHW (PyTorch convention).
    """
    N, Cin, H, W = x_nchw.shape
    Cmid = w1.shape[0]
    Ncls = w2.shape[0]
    itemsize = jnp.dtype(compute_dtype).itemsize

    # Padded width: >= W+2 (one left zero + >=1 right zero), multiple of 16 so the
    # 8-row halo block is lane-aligned.  Promote to a multiple of 128 when the
    # extra padding is modest (taps then need only 2 XLU rolls, no lane relayout).
    w_need = W + 2
    wp16 = _round_up(w_need, 16)
    wp128 = _round_up(w_need, 128)
    Wp = wp128 if wp128 <= (wp16 * 9) // 8 else wp16

    H8 = _round_up(H, 8)
    vmem_limit = _vmem_limit_bytes()
    if tile_h is None:
        tile_h = _pick_tile_h(H8, Wp, N, Cin, Cmid, Ncls, itemsize,
                              budget=int(vmem_limit * 0.55))
    assert tile_h % 8 == 0 and H8 % tile_h == 0
    nH = H8 // tile_h
    L = tile_h * Wp
    Hp = H8 + 8                     # 1 top zero + H data rows + >= 8 bottom zeros
    halo_blk = tile_h // 8          # halo block-index stride (in 8*Wp blocks)

    # Zero-pad (still NCHW; no transposes anywhere) and flatten spatial onto
    # lanes.  allow_input_fusion below lets XLA fuse this pad/convert into the
    # kernel's input DMA instead of materializing a padded activation in HBM.
    x_pad = jnp.pad(x_nchw.astype(compute_dtype),
                    ((0, 0), (0, 0), (1, Hp - 1 - H), (1, Wp - 1 - W)))
    x_flat = x_pad.reshape(N, Cin, Hp * Wp)

    # Fold inference BatchNorm: scale goes into the 3x3 weights, bias stays (f32).
    scale = bn_gamma.astype(jnp.float32) / jnp.sqrt(bn_var.astype(jnp.float32) + eps)
    bias = (bn_beta.astype(jnp.float32)
            - bn_mean.astype(jnp.float32) * scale).reshape(Cmid, 1)
    w1_scaled = w1.astype(jnp.float32) * scale[:, None, None, None]

    per_tap = Cin >= 128
    if per_tap:      # (9, Cmid, Cin): one matmul per tap, K = Cin
        w1_mat = jnp.transpose(w1_scaled, (2, 3, 0, 1)).reshape(9, Cmid, Cin)
    else:            # (3, Cmid, 3*Cin): one matmul per kernel row, K = 3*Cin
        w1_mat = jnp.transpose(w1_scaled, (2, 0, 3, 1)).reshape(3, Cmid, 3 * Cin)
    w1_mat = w1_mat.astype(compute_dtype)
    w2_mat = w2[:, :, 0, 0].astype(compute_dtype)

    flops = 2 * N * nH * L * Cmid * (9 * Cin + Ncls)
    bytes_accessed = ((N * Cin * Hp * Wp + N * nH * Cin * 8 * Wp
                       + 9 * Cin * Cmid + Ncls * Cmid) * itemsize
                      + Cmid * 4 + N * Ncls * H8 * Wp * 4)

    resident = dict(pipeline_mode=pl.Buffered(1))   # constants: single-buffered

    out_flat = pl.pallas_call(
        _bisenet_output_kernel,
        out_shape=jax.ShapeDtypeStruct((N, Ncls, H8 * Wp), jnp.float32),
        grid_spec=pltpu.PrefetchScalarGridSpec(
            num_scalar_prefetch=0,
            grid=(N, nH),
            in_specs=[
                # main rows of this tile (contiguous chunk of the flattened image)
                pl.BlockSpec((None, Cin, L), lambda n, i: (n, 0, i)),
                # 8-row halo = rows immediately below (second view of same array)
                pl.BlockSpec((None, Cin, 8 * Wp),
                             lambda n, i: (n, 0, (i + 1) * halo_blk)),
                pl.BlockSpec(w1_mat.shape, lambda n, i: (0, 0, 0), **resident),
                pl.BlockSpec((Cmid, 1), lambda n, i: (0, 0), **resident),
                pl.BlockSpec((Ncls, Cmid), lambda n, i: (0, 0), **resident),
            ],
            out_specs=pl.BlockSpec((None, Ncls, L), lambda n, i: (n, 0, i)),
        ),
        compiler_params=pltpu.CompilerParams(
            dimension_semantics=("parallel", "parallel"),
            vmem_limit_bytes=vmem_limit,
            allow_input_fusion=[True, True, False, False, False]),
        cost_estimate=pl.CostEstimate(flops=flops, transcendentals=0,
                                      bytes_accessed=bytes_accessed),
    )(x_flat, x_flat, w1_mat, bias, w2_mat)

    # Each tile was already a contiguous chunk of the flattened NCHW output:
    # just un-flatten and strip the padding (no transpose, no extra HBM pass).
    return out_flat.reshape(N, Ncls, H8, Wp)[:, :, :H, :W]


def _reference(x_nchw, w1, bn_gamma, bn_beta, bn_mean, bn_var, w2, eps=1e-5):
    y = lax.conv_general_dilated(x_nchw, w1, window_strides=(1, 1),
                                 padding=((1, 1), (1, 1)),
                                 dimension_numbers=("NCHW", "OIHW", "NCHW"))
    scale = bn_gamma / jnp.sqrt(bn_var + eps)
    bias = bn_beta - bn_mean * scale
    y = y * scale[None, :, None, None] + bias[None, :, None, None]
    y = jnp.maximum(y, 0.0)
    y = lax.conv_general_dilated(y, w2, window_strides=(1, 1),
                                 padding=((0, 0), (0, 0)),
                                 dimension_numbers=("NCHW", "OIHW", "NCHW"))
    return y


def _make_inputs(key, n, cin, cmid, ncls, h, w):
    k1, k2, k3, k4, k5, k6, k7 = jax.random.split(key, 7)
    x = jax.random.normal(k1, (n, cin, h, w), dtype=jnp.float32)
    w1 = jax.random.normal(k2, (cmid, cin, 3, 3), dtype=jnp.float32) * 0.1
    w2 = jax.random.normal(k3, (ncls, cmid, 1, 1), dtype=jnp.float32) * 0.1
    g = 1.0 + 0.1 * jax.random.normal(k4, (cmid,), dtype=jnp.float32)
    b = 0.1 * jax.random.normal(k5, (cmid,), dtype=jnp.float32)
    m = 0.1 * jax.random.normal(k6, (cmid,), dtype=jnp.float32)
    v = jnp.abs(0.5 + 0.1 * jax.random.normal(k7, (cmid,), dtype=jnp.float32))
    return x, w1, g, b, m, v, w2


if __name__ == "__main__":
    key = jax.random.PRNGKey(0)
    keys = jax.random.split(key, 3)

    # Case 1: small shapes consistent with BiSeNetOutput(in_chan, mid_chan, n_classes).
    args = _make_inputs(keys[0], 2, 8, 16, 8, 16, 16)
    ref = jax.block_until_ready(_reference(*args))

    out_f32 = jax.block_until_ready(
        bisenet_output_pallas(*args, compute_dtype=jnp.float32))
    assert out_f32.shape == ref.shape
    assert jnp.allclose(out_f32, ref, atol=2e-3, rtol=2e-3)

    out_bf16 = jax.block_until_ready(
        bisenet_output_pallas(*args, compute_dtype=jnp.bfloat16))  # default path
    assert out_bf16.shape == ref.shape
    assert jnp.allclose(out_bf16, ref, atol=5e-2, rtol=5e-2)

    # Case 2: padded width is 128-aligned -> XLU-roll (aligned-tap) path.
    args2 = _make_inputs(keys[1], 1, 8, 16, 8, 16, 126)
    ref2 = jax.block_until_ready(_reference(*args2))
    out2 = jax.block_until_ready(
        bisenet_output_pallas(*args2, compute_dtype=jnp.float32))
    assert jnp.allclose(out2, ref2, atol=2e-3, rtol=2e-3)

    # Case 3: Cin >= 128 -> per-tap (K = Cin) accumulation path.
    args3 = _make_inputs(keys[2], 1, 128, 32, 8, 8, 16)
    ref3 = jax.block_until_ready(_reference(*args3))
    out3 = jax.block_until_ready(
        bisenet_output_pallas(*args3, compute_dtype=jnp.float32))
    assert jnp.allclose(out3, ref3, atol=2e-3, rtol=2e-3)

    print("KERNEL_OK")
</pallas_src>

<mosaic_0001>
module attributes {stable_mosaic.version = 11 : i64} {
  func.func @_bisenet_output_kernel(%arg0: i32, %arg1: i32, %arg2: memref<1x8x512xf32, #tpu.memory_space<vmem>>, %arg3: memref<1x8x256xf32, #tpu.memory_space<vmem>>, %arg4: memref<3x16x24xf32, #tpu.memory_space<vmem>>, %arg5: memref<16x1xf32, #tpu.memory_space<vmem>>, %arg6: memref<8x16xf32, #tpu.memory_space<vmem>>, %arg7: memref<1x8x512xf32, #tpu.memory_space<vmem>>) attributes {dimension_semantics = [#tpu.dimension_semantics<parallel>, #tpu.dimension_semantics<parallel>], iteration_bounds = array<i64: 2, 1>, scalar_prefetch = 0 : i64, scratch_operands = 0 : i64, tpu.core_type = #tpu.core_type<tc>, window_params = [{transform_indices = @transform_0, window_bounds = array<i64: 1, 8, 512>}, {transform_indices = @transform_1, window_bounds = array<i64: 1, 8, 256>}, {pipeline_mode = #tpu.pipeline_mode<synchronous>, transform_indices = @transform_2, window_bounds = array<i64: 3, 16, 24>}, {pipeline_mode = #tpu.pipeline_mode<synchronous>, transform_indices = @transform_3, window_bounds = array<i64: 16, 1>}, {pipeline_mode = #tpu.pipeline_mode<synchronous>, transform_indices = @transform_4, window_bounds = array<i64: 8, 16>}, {transform_indices = @transform_5, window_bounds = array<i64: 1, 8, 512>}]} {
    %c0 = arith.constant 0 : index
    %c0_0 = arith.constant 0 : index
    %c0_1 = arith.constant 0 : index
    %0 = vector.load %arg2[%c0, %c0_0, %c0_1] : memref<1x8x512xf32, #tpu.memory_space<vmem>>, vector<1x8x512xf32>
    %1 = vector.shape_cast %0 : vector<1x8x512xf32> to vector<8x512xf32>
    %c0_2 = arith.constant 0 : index
    %c0_3 = arith.constant 0 : index
    %c0_4 = arith.constant 0 : index
    %2 = vector.load %arg3[%c0_2, %c0_3, %c0_4] : memref<1x8x256xf32, #tpu.memory_space<vmem>>, vector<1x8x256xf32>
    %3 = vector.shape_cast %2 : vector<1x8x256xf32> to vector<8x256xf32>
    %4 = tpu.concatenate %1, %3 in 1 : vector<8x512xf32>, vector<8x256xf32> -> vector<8x768xf32>
    %5 = vector.extract_strided_slice %4 {offsets = [0, 0], sizes = [8, 512], strides = [1, 1]} : vector<8x768xf32> to vector<8x512xf32>
    %6 = vector.extract_strided_slice %4 {offsets = [0, 1], sizes = [8, 512], strides = [1, 1]} : vector<8x768xf32> to vector<8x512xf32>
    %7 = vector.extract_strided_slice %4 {offsets = [0, 2], sizes = [8, 512], strides = [1, 1]} : vector<8x768xf32> to vector<8x512xf32>
    %8 = tpu.concatenate %5, %6, %7 in 0 : vector<8x512xf32>, vector<8x512xf32>, vector<8x512xf32> -> vector<24x512xf32>
    %c0_5 = arith.constant 0 : index
    %c0_6 = arith.constant 0 : index
    %c0_7 = arith.constant 0 : index
    %9 = vector.load %arg4[%c0_5, %c0_6, %c0_7] : memref<3x16x24xf32, #tpu.memory_space<vmem>>, vector<1x16x24xf32>
    %10 = vector.shape_cast %9 : vector<1x16x24xf32> to vector<16x24xf32>
    %cst = arith.constant dense<0.000000e+00> : vector<16x512xf32>
    %11 = tpu.matmul %10, %8, %cst {dimension_numbers = #tpu.dot_dimension_numbers<[1], [0], [0], [1], [0, 0, 1, 1], [], []>} : vector<16x24xf32>, vector<24x512xf32>, vector<16x512xf32> -> vector<16x512xf32>
    %12 = vector.extract_strided_slice %4 {offsets = [0, 32], sizes = [8, 512], strides = [1, 1]} : vector<8x768xf32> to vector<8x512xf32>
    %13 = vector.extract_strided_slice %4 {offsets = [0, 33], sizes = [8, 512], strides = [1, 1]} : vector<8x768xf32> to vector<8x512xf32>
    %14 = vector.extract_strided_slice %4 {offsets = [0, 34], sizes = [8, 512], strides = [1, 1]} : vector<8x768xf32> to vector<8x512xf32>
    %15 = tpu.concatenate %12, %13, %14 in 0 : vector<8x512xf32>, vector<8x512xf32>, vector<8x512xf32> -> vector<24x512xf32>
    %c1 = arith.constant 1 : index
    %c0_8 = arith.constant 0 : index
    %c0_9 = arith.constant 0 : index
    %16 = vector.load %arg4[%c1, %c0_8, %c0_9] : memref<3x16x24xf32, #tpu.memory_space<vmem>>, vector<1x16x24xf32>
    %17 = vector.shape_cast %16 : vector<1x16x24xf32> to vector<16x24xf32>
    %cst_10 = arith.constant dense<0.000000e+00> : vector<16x512xf32>
    %18 = tpu.matmul %17, %15, %cst_10 {dimension_numbers = #tpu.dot_dimension_numbers<[1], [0], [0], [1], [0, 0, 1, 1], [], []>} : vector<16x24xf32>, vector<24x512xf32>, vector<16x512xf32> -> vector<16x512xf32>
    %19 = arith.addf %11, %18 : vector<16x512xf32>
    %20 = vector.extract_strided_slice %4 {offsets = [0, 64], sizes = [8, 512], strides = [1, 1]} : vector<8x768xf32> to vector<8x512xf32>
    %21 = vector.extract_strided_slice %4 {offsets = [0, 65], sizes = [8, 512], strides = [1, 1]} : vector<8x768xf32> to vector<8x512xf32>
    %22 = vector.extract_strided_slice %4 {offsets = [0, 66], sizes = [8, 512], strides = [1, 1]} : vector<8x768xf32> to vector<8x512xf32>
    %23 = tpu.concatenate %20, %21, %22 in 0 : vector<8x512xf32>, vector<8x512xf32>, vector<8x512xf32> -> vector<24x512xf32>
    %c2 = arith.constant 2 : index
    %c0_11 = arith.constant 0 : index
    %c0_12 = arith.constant 0 : index
    %24 = vector.load %arg4[%c2, %c0_11, %c0_12] : memref<3x16x24xf32, #tpu.memory_space<vmem>>, vector<1x16x24xf32>
    %25 = vector.shape_cast %24 : vector<1x16x24xf32> to vector<16x24xf32>
    %cst_13 = arith.constant dense<0.000000e+00> : vector<16x512xf32>
    %26 = tpu.matmul %25, %23, %cst_13 {dimension_numbers = #tpu.dot_dimension_numbers<[1], [0], [0], [1], [0, 0, 1, 1], [], []>} : vector<16x24xf32>, vector<24x512xf32>, vector<16x512xf32> -> vector<16x512xf32>
    %27 = arith.addf %19, %26 : vector<16x512xf32>
    %c0_14 = arith.constant 0 : index
    %c0_15 = arith.constant 0 : index
    %28 = vector.load %arg5[%c0_14, %c0_15] : memref<16x1xf32, #tpu.memory_space<vmem>>, vector<16x1xf32>
    %29 = vector.broadcast %28 : vector<16x1xf32> to vector<16x512xf32>
    %30 = arith.addf %27, %29 : vector<16x512xf32>
    %cst_16 = arith.constant 0.000000e+00 : f32
    %31 = vector.broadcast %cst_16 : f32 to vector<16x512xf32>
    %32 = arith.maximumf %30, %31 : vector<16x512xf32>
    %c0_17 = arith.constant 0 : index
    %c0_18 = arith.constant 0 : index
    %33 = vector.load %arg6[%c0_17, %c0_18] : memref<8x16xf32, #tpu.memory_space<vmem>>, vector<8x16xf32>
    %cst_19 = arith.constant dense<0.000000e+00> : vector<8x512xf32>
    %34 = tpu.matmul %33, %32, %cst_19 {dimension_numbers = #tpu.dot_dimension_numbers<[1], [0], [0], [1], [0, 0, 1, 1], [], []>} : vector<8x16xf32>, vector<16x512xf32>, vector<8x512xf32> -> vector<8x512xf32>
    %c0_20 = arith.constant 0 : index
    %c0_21 = arith.constant 0 : index
    %c0_22 = arith.constant 0 : index
    %35 = vector.load %arg7[%c0_20, %c0_21, %c0_22] : memref<1x8x512xf32, #tpu.memory_space<vmem>>, vector<1x8x512xf32>
    %36 = vector.shape_cast %35 : vector<1x8x512xf32> to vector<8x512xf32>
    %37 = vector.shape_cast %34 : vector<8x512xf32> to vector<1x8x512xf32>
    tpu.vector_store %arg7[%c0_20, %c0_21, %c0_22], %37 {strides = array<i32>} : memref<1x8x512xf32, #tpu.memory_space<vmem>>, vector<1x8x512xf32>,
    return
  }
  func.func @transform_0(%arg0: i32, %arg1: i32) -> (i32, i32, i32) {
    %c0_i32 = arith.constant 0 : i32
    %c0_i32_0 = arith.constant 0 : i32
    return %arg0, %c0_i32, %arg1 : i32, i32, i32
  }
  func.func @transform_1(%arg0: i32, %arg1: i32) -> (i32, i32, i32) {
    %c1_i32 = arith.constant 1 : i32
    %0 = arith.addi %arg1, %c1_i32 : i32
    %c2_i32 = arith.constant 2 : i32
    %1 = arith.muli %0, %c2_i32 : i32
    %c0_i32 = arith.constant 0 : i32
    %c0_i32_0 = arith.constant 0 : i32
    return %arg0, %c0_i32, %1 : i32, i32, i32
  }
  func.func @transform_2(%arg0: i32, %arg1: i32) -> (i32, i32, i32) {
    %c0_i32 = arith.constant 0 : i32
    %c0_i32_0 = arith.constant 0 : i32
    %c0_i32_1 = arith.constant 0 : i32
    %c0_i32_2 = arith.constant 0 : i32
    return %c0_i32, %c0_i32_0, %c0_i32_1 : i32, i32, i32
  }
  func.func @transform_3(%arg0: i32, %arg1: i32) -> (i32, i32) {
    %c0_i32 = arith.constant 0 : i32
    %c0_i32_0 = arith.constant 0 : i32
    %c0_i32_1 = arith.constant 0 : i32
    return %c0_i32, %c0_i32_0 : i32, i32
  }
  func.func @transform_4(%arg0: i32, %arg1: i32) -> (i32, i32) {
    %c0_i32 = arith.constant 0 : i32
    %c0_i32_0 = arith.constant 0 : i32
    %c0_i32_1 = arith.constant 0 : i32
    return %c0_i32, %c0_i32_0 : i32, i32
  }
  func.func @transform_5(%arg0: i32, %arg1: i32) -> (i32, i32, i32) {
    %c0_i32 = arith.constant 0 : i32
    %c0_i32_0 = arith.constant 0 : i32
    return %arg0, %c0_i32, %arg1 : i32, i32, i32
  }
}

</mosaic_0001>

<llo_original>
// kernel: tpu_custom_call.1
$region0: #{tpu_custom_call.1}
  #allocation0 [shape = 'u32[]', space=smem, size = 0x4, offset = 0x4, fixed_abs, tag = 'smem constant byte address 0x4 - core index']
  #allocation1 [shape = 'u32[144,128]{1,0:T(1,128)}', space=vmem, size = 0x12000, scoped, tag = 'internal scratch']
  %s0 = inlined_call_operand.hbm [shape: f32[2,8,768], index: 0, kind: input, shape index: {}]
  %s1 = inlined_call_operand.hbm [shape: f32[2,8,768], index: 1, kind: input, shape index: {}]
  %s2 = inlined_call_operand.hbm [shape: f32[3,16,24], index: 2, kind: input, shape index: {}]
  %s3 = inlined_call_operand.vmem [shape: f32[16,1], index: 3, kind: input, shape index: {}]
  %s4 = inlined_call_operand.vmem [shape: f32[8,16], index: 4, kind: input, shape index: {}]
  %s5 = inlined_call_operand.hbm [shape: f32[2,8,512], index: 5, kind: output, shape index: {}]
  %s6 = sld [smem:[#allocation0]]
  $region65: #{tpu_custom_call.1} parent=0
    _
  %s8 = ssub.s32 1, %s6
  %s9 = scalar_select 0, %s8, %s6
  $region1: #{tpu_custom_call.1} parent=0
    #allocation2 [shape = 'u8[32768]{0}', space=vmem, size = 0x8000, scoped, tag = 'input window, operand 0']
    #allocation3 [shape = 's32[2]{0}', space=sflag, size = 0x8, scoped, tag = 'scoped memory for tpu_custom_call.1']
    #allocation4 [shape = 's32[2]{0}', space=sflag, size = 0x8, scoped, tag = 'scoped memory for tpu_custom_call.1']
    #allocation5 [shape = 'u8[16384]{0}', space=vmem, size = 0x4000, scoped, tag = 'input window, operand 1']
    #allocation6 [shape = 's32[2]{0}', space=sflag, size = 0x8, scoped, tag = 'scoped memory for tpu_custom_call.1']
    #allocation7 [shape = 'u8[24576]{0}', space=vmem, size = 0x6000, scoped, tag = 'input window, operand 2, single buffered']
    #allocation8 [shape = 'u8[32768]{0}', space=vmem, size = 0x8000, scoped, tag = 'output window, operand 0']
    %10 = vsyncpa [#allocation3], 0
    %s11 = scalar_lea.sflag [#allocation3], 1
    %12 = vsyncpa %s11, 0
    %13 = vsyncpa [#allocation6], 0
    %s14 = scalar_lea.sflag [#allocation6], 1
    %15 = vsyncpa %s14, 0
    %16 = vsyncpa [#allocation4], 0
    %s17 = scalar_lea.sflag [#allocation4], 1
    %18 = vsyncpa %s17, 0
    loop: start=0, step=1, limit=4
    $region2: #{tpu_custom_call.1} parent=1 // loop_pre_header
      _
    $region3: #{tpu_custom_call.1} parent=1 // loop_header
      %s20 = sphi 0, %s24
      %p21 = scmp.ge.s32.totalorder %s20, 4
      %s27 = sphi 0, %s39
      %s28 = sphi 0, %s35
      %s29 = sphi 0, %s27
      %s30 = sphi 0, %s28
      %s31 = sphi 0, %s29
      %s32 = sphi 0, %s30
      %s44 = sphi 0, %s46
      %s47 = sphi 0, %s44
      %s48 = sphi 0, %s47
      %s64 = sphi 0, %s48
      %s76 = sphi 0, %s78
      %s79 = sphi 0, %s76
      %s80 = sphi 0, %s79
      %s96 = sphi 0, %s80
      %s100 = sphi 0, %s100
      %s102 = sphi 0, %s100
      %s103 = sphi 0, %s102
      %s117 = sphi 0, %s103
      %s121 = sphi 0, %s121
      %s123 = sphi 0, %s121
      %s124 = sphi 0, %s123
      %s138 = sphi 0, %s124
      %s142 = sphi 0, %s142
      %s144 = sphi 0, %s142
      %s145 = sphi 0, %s144
      %s159 = sphi 0, %s145
      %s167 = sphi 0, %s169
      %s170 = sphi 0, %s167
      %s171 = sphi 0, %s170
      %s187 = sphi 0, %s171
    $region4: #{tpu_custom_call.1} parent=1 // loop_header_branch
      %23 = sbr.rel (%p21) target = $region8
    $region5: #{tpu_custom_call.1} parent=1 // loop_body
      %s25 = ssub.s32 %s20, 1
      %s26 = ssub.s32 %s20, 2
      %s33 = sadd.s32 1, %s28
      %p34 = scmp.ge.s32.totalorder %s33, 1
      %s35 = scalar_select %p34, 0, %s33
      %s36 = sadd.s32 1, %s27
      %s37 = scalar_select %p34, %s36, %s27
      %p38 = scmp.ge.s32.totalorder %s37, 2
      %s39 = scalar_select %p38, 0, %s37
      %s40 = ssub.s32 %s27, %s39
      %s41 = ssub.s32 %s28, %s35
      %s42 = sor.u32 %s40, %s41
      %p43 = scmp.eq.s32.totalorder %s42, 0
      %s45 = sadd.s32 %s44, 1
      %s46 = scalar_select %p43, %s44, %s45
      %p49 = pneg %p43
      %p50 = scmp.eq.s32.totalorder %s20, 1
      %p51 = por %p49, %p50
      %p52 = scmp.ne.s32.totalorder %s44, %s47
      %p53 = scmp.eq.s32.totalorder %s20, 0
      %p54 = por %p52, %p53
      %p55 = scmp.ne.s32.totalorder %s44, %s47
      %p56 = scmp.eq.s32.totalorder %s25, 1
      %p57 = por %p55, %p56
      %p58 = scmp.ne.s32.totalorder %s47, %s48
      %p59 = scmp.eq.s32.totalorder %s25, 0
      %p60 = por %p58, %p59
      %p61 = scmp.ne.s32.totalorder %s47, %s48
      %p62 = scmp.eq.s32.totalorder %s26, 1
      %p63 = por %p61, %p62
      %p65 = scmp.ne.s32.totalorder %s48, %s64
      %p66 = scmp.eq.s32.totalorder %s26, 0
      %p67 = por %p65, %p66
      %s68 = sadd.s32 %s28, 1
      %s69 = smul.u32 %s68, 2
      %s70 = sadd.s32 %s35, 1
      %s71 = smul.u32 %s70, 2
      %s72 = ssub.s32 %s27, %s39
      %s73 = ssub.s32 %s69, %s71
      %s74 = sor.u32 %s72, %s73
      %p75 = scmp.eq.s32.totalorder %s74, 0
      %s77 = sadd.s32 %s76, 1
      %s78 = scalar_select %p75, %s76, %s77
      %p81 = pneg %p75
      %p82 = scmp.eq.s32.totalorder %s20, 1
      %p83 = por %p81, %p82
      %p84 = scmp.ne.s32.totalorder %s76, %s79
      %p85 = scmp.eq.s32.totalorder %s20, 0
      %p86 = por %p84, %p85
      %p87 = scmp.ne.s32.totalorder %s76, %s79
      %p88 = scmp.eq.s32.totalorder %s25, 1
      %p89 = por %p87, %p88
      %p90 = scmp.ne.s32.totalorder %s79, %s80
      %p91 = scmp.eq.s32.totalorder %s25, 0
      %p92 = por %p90, %p91
      %p93 = scmp.ne.s32.totalorder %s79, %s80
      %p94 = scmp.eq.s32.totalorder %s26, 1
      %p95 = por %p93, %p94
      %p97 = scmp.ne.s32.totalorder %s80, %s96
      %p98 = scmp.eq.s32.totalorder %s26, 0
      %p99 = por %p97, %p98
      %s101 = sadd.s32 %s100, 1
      %p104 = scmp.eq.s32.totalorder %s20, 1
      %p105 = scmp.ne.s32.totalorder %s100, %s102
      %p106 = scmp.eq.s32.totalorder %s20, 0
      %p107 = por %p105, %p106
      %p108 = scmp.ne.s32.totalorder %s100, %s102
      %p109 = scmp.eq.s32.totalorder %s25, 1
      %p110 = por %p108, %p109
      %p111 = scmp.ne.s32.totalorder %s102, %s103
      %p112 = scmp.eq.s32.totalorder %s25, 0
      %p113 = por %p111, %p112
      %p114 = scmp.ne.s32.totalorder %s102, %s103
      %p115 = scmp.eq.s32.totalorder %s26, 1
      %p116 = por %p114, %p115
      %p118 = scmp.ne.s32.totalorder %s103, %s117
      %p119 = scmp.eq.s32.totalorder %s26, 0
      %p120 = por %p118, %p119
      %s122 = sadd.s32 %s121, 1
      %p125 = scmp.eq.s32.totalorder %s20, 1
      %p126 = scmp.ne.s32.totalorder %s121, %s123
      %p127 = scmp.eq.s32.totalorder %s20, 0
      %p128 = por %p126, %p127
      %p129 = scmp.ne.s32.totalorder %s121, %s123
      %p130 = scmp.eq.s32.totalorder %s25, 1
      %p131 = por %p129, %p130
      %p132 = scmp.ne.s32.totalorder %s123, %s124
      %p133 = scmp.eq.s32.totalorder %s25, 0
      %p134 = por %p132, %p133
      %p135 = scmp.ne.s32.totalorder %s123, %s124
      %p136 = scmp.eq.s32.totalorder %s26, 1
      %p137 = por %p135, %p136
      %p139 = scmp.ne.s32.totalorder %s124, %s138
      %p140 = scmp.eq.s32.totalorder %s26, 0
      %p141 = por %p139, %p140
      %s143 = sadd.s32 %s142, 1
      %p146 = scmp.eq.s32.totalorder %s20, 1
      %p147 = scmp.ne.s32.totalorder %s142, %s144
      %p148 = scmp.eq.s32.totalorder %s20, 0
      %p149 = por %p147, %p148
      %p150 = scmp.ne.s32.totalorder %s142, %s144
      %p151 = scmp.eq.s32.totalorder %s25, 1
      %p152 = por %p150, %p151
      %p153 = scmp.ne.s32.totalorder %s144, %s145
      %p154 = scmp.eq.s32.totalorder %s25, 0
      %p155 = por %p153, %p154
      %p156 = scmp.ne.s32.totalorder %s144, %s145
      %p157 = scmp.eq.s32.totalorder %s26, 1
      %p158 = por %p156, %p157
      %p160 = scmp.ne.s32.totalorder %s145, %s159
      %p161 = scmp.eq.s32.totalorder %s26, 0
      %p162 = por %p160, %p161
      %s163 = ssub.s32 %s27, %s39
      %s164 = ssub.s32 %s28, %s35
      %s165 = sor.u32 %s163, %s164
      %p166 = scmp.eq.s32.totalorder %s165, 0
      %s168 = sadd.s32 %s167, 1
      %s169 = scalar_select %p166, %s167, %s168
      %p172 = pneg %p166
      %p173 = scmp.eq.s32.totalorder %s20, 1
      %p174 = por %p172, %p173
      %p175 = scmp.ne.s32.totalorder %s167, %s170
      %p176 = scmp.eq.s32.totalorder %s20, 0
      %p177 = por %p175, %p176
      %p178 = scmp.ne.s32.totalorder %s167, %s170
      %p179 = scmp.eq.s32.totalorder %s25, 1
      %p180 = por %p178, %p179
      %p181 = scmp.ne.s32.totalorder %s170, %s171
      %p182 = scmp.eq.s32.totalorder %s25, 0
      %p183 = por %p181, %p182
      %p184 = scmp.ne.s32.totalorder %s170, %s171
      %p185 = scmp.eq.s32.totalorder %s26, 1
      %p186 = por %p184, %p185
      %p188 = scmp.ne.s32.totalorder %s171, %s187
      %p189 = scmp.eq.s32.totalorder %s26, 0
      %p190 = por %p188, %p189
      %p191 = scmp.le.s32.totalorder 1, %s20
      %p192 = scmp.lt.s32.totalorder %s20, 3
      %p193 = pnand %p191, %p192
      %p194 = pneg %p193
      // Predicated region
      $region9: #{tpu_custom_call.1} parent=5 // pred_check
        _
      $region10: #{tpu_custom_call.1} parent=5 // pred_check_branch
        %196 = sbr.rel (%p193) target = $region12
      $region11: #{tpu_custom_call.1} parent=5 // pred_region
        %s197 = ssub.s32 %s20, 1
        // Predicated region
        $region13: #{tpu_custom_call.1} parent=11 // pred_check
          %p198 = pneg %p113
        $region14: #{tpu_custom_call.1} parent=11 // pred_check_branch
          %200 = sbr.rel (%p198) target = $region16
        $region15: #{tpu_custom_call.1} parent=11 // pred_region
          %s202 = ssub.s32 768, 768
          %203 = vsyncadd [#allocation6], %s202
          %s204 = sshll.u32 [#allocation7], 4
          %s205 = int_to_ptr.vmem [resolvable:$true] %s204
          %210 = dma.hbm_to_vmem [thread:$0]  %s2, 768, %s205, [#allocation6], 128, 128, 8
        $region16: #{tpu_custom_call.1} parent=11 // pred_fallthru
          _
        // Predicated region
        $region17: #{tpu_custom_call.1} parent=11 // pred_check
          %p211 = pneg %p134
        $region18: #{tpu_custom_call.1} parent=11 // pred_check_branch
          %213 = sbr.rel (%p211) target = $region20
        $region19: #{tpu_custom_call.1} parent=11 // pred_region
          _
        $region20: #{tpu_custom_call.1} parent=11 // pred_fallthru
          _
        // Predicated region
        $region21: #{tpu_custom_call.1} parent=11 // pred_check
          %p214 = pneg %p155
        $region22: #{tpu_custom_call.1} parent=11 // pred_check_branch
          %216 = sbr.rel (%p214) target = $region24
        $region23: #{tpu_custom_call.1} parent=11 // pred_region
          _
        $region24: #{tpu_custom_call.1} parent=11 // pred_fallthru
          _
      $region12: #{tpu_custom_call.1} parent=5 // pred_fallthru
        _
      %p217 = scmp.lt.s32.totalorder %s20, 2
      // Predicated region
      $region25: #{tpu_custom_call.1} parent=5 // pred_check
        %p218 = pneg %p217
      $region26: #{tpu_custom_call.1} parent=5 // pred_check_branch
        %220 = sbr.rel (%p218) target = $region28
      $region27: #{tpu_custom_call.1} parent=5 // pred_region
        // Predicated region
        $region29: #{tpu_custom_call.1} parent=27 // pred_check
          %p221 = pneg %p54
        $region30: #{tpu_custom_call.1} parent=27 // pred_check_branch
          %223 = sbr.rel (%p221) target = $region32
        $region31: #{tpu_custom_call.1} parent=27 // pred_region
          %s224 = sand.u32 %s44, 1
          %s225 = scalar_lea.sflag [#allocation3], %s224
          %s226 = sand.u32 %s44, 1
          %s227 = smul.addr %s226, 32
          %s228 = scalar_lea.vmem [#allocation2], %s227
          %s229 = smul.u32 4, %s28
          %s230 = ssub.s32 6, %s229
          %p231 = scmp.lt.s32.totalorder %s230, 4
          %s232 = scalar_select %p231, %s230, 4
          %s233 = smul.u32 128, %s232
          %s235 = ssub.s32 512, %s233
          %236 = vsyncadd %s225, %s235
          %p237 = scmp.ne.s32.totalorder 0, %s233
          %s238 = smul.addr %s27, 6
          %s239 = sadd.s32 %s229, %s238
          %s240 = smul.addr %s239, 128
          %s241 = scalar_lea.hbm %s0, %s240
          %s242 = smul.u32 %s232, 8
          %s243 = sshll.u32 %s242, 4
          %s244 = sshll.u32 %s228, 4
          %s245 = int_to_ptr.vmem [resolvable:$true] %s244
          %247 = dma.hbm_to_vmem [thread:$0]  (%p237), %s241, %s243, %s245, %s225
        $region32: #{tpu_custom_call.1} parent=27 // pred_fallthru
          _
        // Predicated region
        $region33: #{tpu_custom_call.1} parent=27 // pred_check
          %p248 = pneg %p86
        $region34: #{tpu_custom_call.1} parent=27 // pred_check_branch
          %250 = sbr.rel (%p248) target = $region36
        $region35: #{tpu_custom_call.1} parent=27 // pred_region
          %s251 = sand.u32 %s20, 1
          %s252 = scalar_lea.sflag [#allocation6], %s251
          %s253 = sand.u32 %s76, 1
          %s254 = smul.addr %s253, 16
          %s255 = scalar_lea.vmem [#allocation5], %s254
          %s256 = sadd.s32 %s28, 1
          %s257 = smul.u32 %s256, 2
          %s258 = smul.u32 2, %s257
          %s260 = ssub.s32 256, 256
          %261 = vsyncadd %s252, %s260
          %s262 = smul.addr %s27, 6
          %s263 = sadd.s32 %s258, %s262
          %s264 = smul.addr %s263, 128
          %s265 = scalar_lea.hbm %s1, %s264
          %s267 = sshll.u32 %s255, 4
          %s268 = int_to_ptr.vmem [resolvable:$true] %s267
          %270 = dma.hbm_to_vmem [thread:$0]  %s265, 256, %s268, %s252
        $region36: #{tpu_custom_call.1} parent=27 // pred_fallthru
          _
      $region28: #{tpu_custom_call.1} parent=5 // pred_fallthru
        _
      %p271 = scmp.le.s32.totalorder 1, %s20
      %p272 = scmp.lt.s32.totalorder %s20, 3
      %p273 = pnand %p271, %p272
      %p274 = pneg %p273
      // Predicated region
      $region37: #{tpu_custom_call.1} parent=5 // pred_check
        _
      $region38: #{tpu_custom_call.1} parent=5 // pred_check_branch
        %276 = sbr.rel (%p273) target = $region40
      $region39: #{tpu_custom_call.1} parent=5 // pred_region
        %s277 = ssub.s32 %s20, 1
        %s278 = sand.u32 %s47, 1
        %s279 = scalar_lea.sflag [#allocation3], %s278
        %s280 = sand.u32 %s47, 1
        %s281 = smul.addr %s280, 32
        %s282 = scalar_lea.vmem [#allocation2], %s281
        // Predicated region
        $region41: #{tpu_custom_call.1} parent=39 // pred_check
          %p283 = pneg %p60
        $region42: #{tpu_custom_call.1} parent=39 // pred_check_branch
          %285 = sbr.rel (%p283) target = $region44
        $region43: #{tpu_custom_call.1} parent=39 // pred_region
          %286 = dma.done %s279, 512
        $region44: #{tpu_custom_call.1} parent=39 // pred_fallthru
          _
        %s287 = sand.u32 %s25, 1
        %s288 = scalar_lea.sflag [#allocation6], %s287
        %s289 = sand.u32 %s79, 1
        %s290 = smul.addr %s289, 16
        %s291 = scalar_lea.vmem [#allocation5], %s290
        // Predicated region
        $region45: #{tpu_custom_call.1} parent=39 // pred_check
          %p292 = pneg %p92
        $region46: #{tpu_custom_call.1} parent=39 // pred_check_branch
          %294 = sbr.rel (%p292) target = $region48
        $region47: #{tpu_custom_call.1} parent=39 // pred_region
          %295 = dma.done %s288, 256
        $region48: #{tpu_custom_call.1} parent=39 // pred_fallthru
          _
        // Predicated region
        $region49: #{tpu_custom_call.1} parent=39 // pred_check
          %p296 = pneg %p113
        $region50: #{tpu_custom_call.1} parent=39 // pred_check_branch
          %298 = sbr.rel (%p296) target = $region52
        $region51: #{tpu_custom_call.1} parent=39 // pred_region
          %299 = dma.done [#allocation6], 768
        $region52: #{tpu_custom_call.1} parent=39 // pred_fallthru
          _
        %s300 = sand.u32 %s47, 1
        %s301 = scalar_lea.sflag [#allocation3], %s300
        %s302 = sand.u32 %s47, 1
        %s303 = smul.addr %s302, 32
        %s304 = scalar_lea.vmem [#allocation2], %s303
        %p305 = pneg %p60
        %p306 = pneg %p57
        %s307 = sand.u32 %s25, 1
        %s308 = scalar_lea.sflag [#allocation6], %s307
        %s309 = sand.u32 %s79, 1
        %s310 = smul.addr %s309, 16
        %s311 = scalar_lea.vmem [#allocation5], %s310
        %p312 = pneg %p92
        %p313 = pneg %p89
        %p314 = pneg %p113
        %p315 = pneg %p110
        %p316 = pneg %p134
        %p317 = pneg %p131
        %p318 = pneg %p155
        %p319 = pneg %p152
        %p320 = pneg %p183
        %p321 = pneg %p180
        %s322 = sand.u32 %s170, 1
        %s323 = scalar_lea.sflag [#allocation4], %s322
        %s324 = sand.u32 %s170, 1
        %s325 = smul.addr %s324, 32
        %s326 = scalar_lea.vmem [#allocation8], %s325
        %s327 = smul.u32 4, %s30
        %s328 = ssub.s32 6, %s327
        %p329 = scmp.lt.s32.totalorder %s328, 4
        %s330 = scalar_select %p329, %s328, 4
        %s331 = smul.u32 128, %s330
        %s332 = sadd.s32 %s30, 1
        %s333 = smul.u32 %s332, 2
        %s334 = smul.u32 2, %s333
        %s335 = smul.u32 4, %s30
        %v336 = vld [vmem:[%s282] sm:$0xff]
        %v337 = vld [vmem:[%s282 + $0x8] sm:$0xff]
        %v338 = vld [vmem:[%s282 + $0x10] sm:$0xff]
        %v339 = vld [vmem:[%s282 + $0x18] sm:$0xff]
        %v340 = vld [vmem:[%s291] sm:$0xff]
        %346 = vrot.lane.b32.xlu0 %v336, 127
        %v347 = vpop.permute.xlu0 %346
        %348 = vrot.lane.b32.xlu0 %v337, 127
        %v349 = vpop.permute.xlu0 %348
        %350 = vrot.lane.b32.xlu0 %v338, 127
        %v351 = vpop.permute.xlu0 %350
        %352 = vrot.lane.b32.xlu0 %v339, 127
        %v353 = vpop.permute.xlu0 %352
        %354 = vrot.lane.b32.xlu0 %v340, 127
        %v355 = vpop.permute.xlu0 %354
        %vm356 = vcmask 1039360
        %v357 = vsel %vm356, %v347, %v349
        %v358 = vsel %vm356, %v349, %v351
        %v359 = vsel %vm356, %v351, %v353
        %v360 = vsel %vm356, %v353, %v355
        %365 = vrot.lane.b32.xlu0 %v336, 126
        %v366 = vpop.permute.xlu0 %365
        %367 = vrot.lane.b32.xlu0 %v337, 126
        %v368 = vpop.permute.xlu0 %367
        %369 = vrot.lane.b32.xlu0 %v338, 126
        %v370 = vpop.permute.xlu0 %369
        %371 = vrot.lane.b32.xlu0 %v339, 126
        %v372 = vpop.permute.xlu0 %371
        %373 = vrot.lane.b32.xlu0 %v340, 126
        %v374 = vpop.permute.xlu0 %373
        %vm375 = vcmask 1031168
        %v376 = vsel %vm375, %v366, %v368
        %v377 = vsel %vm375, %v368, %v370
        %v378 = vsel %vm375, %v370, %v372
        %v379 = vsel %vm375, %v372, %v374
        %v384 = vld [vmem:[#allocation7] sm:$0xff]
        %v385 = vld [vmem:[#allocation7 + $0x8] sm:$0xff]
        %s386 = scalar_lea.vmem [#allocation7], 16
        %v387 = vld [vmem:[%s386] sm:$0xff]
        %v388 = vld [vmem:[%s386 + $0x8] sm:$0xff]
        %389 = vrot.lane.b32.xlu0 %v336, 96
        %v390 = vpop.permute.xlu0 %389
        %391 = vrot.lane.b32.xlu0 %v337, 96
        %v392 = vpop.permute.xlu0 %391
        %393 = vrot.lane.b32.xlu0 %v338, 96
        %v394 = vpop.permute.xlu0 %393
        %395 = vrot.lane.b32.xlu0 %v339, 96
        %v396 = vpop.permute.xlu0 %395
        %397 = vrot.lane.b32.xlu0 %v340, 96
        %v398 = vpop.permute.xlu0 %397
        %399 = vrot.lane.b32.xlu0 %v357, 96
        %v400 = vpop.permute.xlu0 %399
        %401 = vrot.lane.b32.xlu0 %v358, 96
        %v402 = vpop.permute.xlu0 %401
        %403 = vrot.lane.b32.xlu0 %v359, 96
        %v404 = vpop.permute.xlu0 %403
        %405 = vrot.lane.b32.xlu0 %v360, 96
        %v406 = vpop.permute.xlu0 %405
        %407 = vrot.lane.b32.xlu0 %v355, 96
        %v408 = vpop.permute.xlu0 %407
        %409 = vrot.lane.b32.xlu0 %v376, 96
        %v410 = vpop.permute.xlu0 %409
        %411 = vrot.lane.b32.xlu0 %v377, 96
        %v412 = vpop.permute.xlu0 %411
        %413 = vrot.lane.b32.xlu0 %v378, 96
        %v414 = vpop.permute.xlu0 %413
        %415 = vrot.lane.b32.xlu0 %v379, 96
        %v416 = vpop.permute.xlu0 %415
        %417 = vrot.lane.b32.xlu0 %v374, 96
        %v418 = vpop.permute.xlu0 %417
        %vm419 = vcmask 785408
        %v420 = vsel %vm419, %v390, %v392
        %v421 = vsel %vm419, %v392, %v394
        %v422 = vsel %vm419, %v394, %v396
        %v423 = vsel %vm419, %v396, %v398
        %v424 = vsel %vm419, %v400, %v402
        %v425 = vsel %vm419, %v402, %v404
        %v426 = vsel %vm419, %v404, %v406
        %v427 = vsel %vm419, %v406, %v408
        %v428 = vsel %vm419, %v410, %v412
        %v429 = vsel %vm419, %v412, %v414
        %v430 = vsel %vm419, %v414, %v416
        %v431 = vsel %vm419, %v416, %v418
        %vm444 = vcmask 195584
        %v446 = vsel %vm444, %v387, 0
        %v449 = vsel %vm444, %v388, 0
        %451 = vmatprep.subr.mxu0 %v421
        %452 = vmatpush1.msra.mxu0 %v420
        %453 = vmatprep.subr.mxu0 %v425
        %454 = vmatpush1.msra.mxu0 %v424
        %455 = vmatprep.subr.mxu0 %v429
        %456 = vmatpush1.msra.mxu0 %v428
        %457 = vmatprep.subr.mxu0 0.0
        %458 = vmatpush1.msra.mxu0 0.0
        %459 = vmatprep.subr.mxu0 0.0
        %460 = vmatpush1.msra.mxu0 0.0
        %461 = vmatprep.subr.mxu0 0.0
        %462 = vmatpush1.msra.mxu0 0.0
        %463 = vmatprep.subr.mxu0 0.0
        %464 = vmatpush1.msra.mxu0 0.0
        %465 = vmatprep.subr.mxu0 0.0
        %466 = vmatpush1.msra.mxu0 0.0
        %467 = vmatprep.subr.mxu0 0.0
        %468 = vmatpush1.msra.mxu0 0.0
        %469 = vmatprep.subr.mxu0 0.0
        %470 = vmatpush1.msra.mxu0 0.0
        %471 = vmatprep.subr.mxu0 0.0
        %472 = vmatpush1.msra.mxu0 0.0
        %473 = vmatprep.subr.mxu0 0.0
        %474 = vmatpush1.msra.mxu0 0.0
        %475 = vmatprep.subr.mxu0 0.0
        %476 = vmatpush1.msra.mxu0 0.0
        %477 = vmatprep.subr.mxu0 0.0
        %478 = vmatpush1.msra.mxu0 0.0
        %479 = vmatprep.subr.mxu0 0.0
        %480 = vmatpush1.msra.mxu0 0.0
        %481 = vmatprep.subr.mxu0 0.0
        %482 = vmatpush1.msra.mxu0 0.0
        %483 = vmatprep.subr.mxu0 0.0
        %484 = vmatpush1.msra.mxu0 0.0
        %485 = vmatprep.subr.mxu0 0.0
        %486 = vmatpush1.msra.mxu0 0.0
        %487 = vmatprep.subr.mxu0 0.0
        %488 = vmatpush1.msra.mxu0 0.0
        %489 = vmatprep.subr.mxu0 0.0
        %490 = vmatpush1.msra.mxu0 0.0
        %491 = vmatprep.subr.mxu0 0.0
        %492 = vmatpush1.msra.mxu0 0.0
        %493 = vmatprep.subr.mxu0 0.0
        %494 = vmatpush1.msra.mxu0 0.0
        %495 = vmatprep.subr.mxu0 0.0
        %496 = vmatpush1.msra.mxu0 0.0
        %497 = vmatprep.subr.mxu0 0.0
        %498 = vmatpush1.msra.mxu0 0.0
        %499 = vmatprep.subr.mxu0 0.0
        %500 = vmatpush1.msra.mxu0 0.0
        %501 = vmatprep.subr.mxu0 0.0
        %502 = vmatpush1.msra.mxu0 0.0
        %503 = vmatprep.subr.mxu0 0.0
        %504 = vmatpush1.msra.mxu0 0.0
        %505 = vmatprep.subr.mxu0 0.0
        %506 = vmatpush1.msra.mxu0 0.0
        %507 = vmatprep.subr.mxu0 0.0
        %508 = vmatpush1.msra.mxu0 0.0
        %509 = vmatprep.subr.mxu0 0.0
        %510 = vmatpush1.msra.mxu0 0.0
        %511 = vmatprep.subr.mxu0 0.0
        %512 = vmatpush1.msra.mxu0 0.0
        %513 = vmatprep.subr.mxu0 0.0
        %514 = vmatpush1.msra.mxu0 0.0
        %515 = vmatprep.mubr.f32.mxu0 0.0
        %516 = vmatmul.mubr.f32.gmra.mrb[0].mxu0 %v446
        %v517 = vpop.f32.mrb[0].mxu0
        %v518 = vadd.f32 0.0, %v517
        %v519 = vpop.f32.mrb[0].mxu0
        %v520 = vadd.f32 0.0, %v519
        %521 = vmatprep.mubr.f32.mxu0 0.0
        %522 = vmatmul.mubr.f32.gmra.mrb[0].mxu0 %v449
        %v523 = vpop.f32.mrb[0].mxu0
        %v524 = vadd.f32 0.0, %v523
        %v525 = vpop.f32.mrb[0].mxu0
        %v526 = vadd.f32 0.0, %v525
        %527 = vdwg.mxu0
        %528 = vmatprep.subr.mxu0 %v423
        %529 = vmatpush1.msra.mxu0 %v422
        %530 = vmatprep.subr.mxu0 %v427
        %531 = vmatpush1.msra.mxu0 %v426
        %532 = vmatprep.subr.mxu0 %v431
        %533 = vmatpush1.msra.mxu0 %v430
        %534 = vmatprep.subr.mxu0 0.0
        %535 = vmatpush1.msra.mxu0 0.0
        %536 = vmatprep.subr.mxu0 0.0
        %537 = vmatpush1.msra.mxu0 0.0
        %538 = vmatprep.subr.mxu0 0.0
        %539 = vmatpush1.msra.mxu0 0.0
        %540 = vmatprep.subr.mxu0 0.0
        %541 = vmatpush1.msra.mxu0 0.0
        %542 = vmatprep.subr.mxu0 0.0
        %543 = vmatpush1.msra.mxu0 0.0
        %544 = vmatprep.subr.mxu0 0.0
        %545 = vmatpush1.msra.mxu0 0.0
        %546 = vmatprep.subr.mxu0 0.0
        %547 = vmatpush1.msra.mxu0 0.0
        %548 = vmatprep.subr.mxu0 0.0
        %549 = vmatpush1.msra.mxu0 0.0
        %550 = vmatprep.subr.mxu0 0.0
        %551 = vmatpush1.msra.mxu0 0.0
        %552 = vmatprep.subr.mxu0 0.0
        %553 = vmatpush1.msra.mxu0 0.0
        %554 = vmatprep.subr.mxu0 0.0
        %555 = vmatpush1.msra.mxu0 0.0
        %556 = vmatprep.subr.mxu0 0.0
        %557 = vmatpush1.msra.mxu0 0.0
        %558 = vmatprep.subr.mxu0 0.0
        %559 = vmatpush1.msra.mxu0 0.0
        %560 = vmatprep.subr.mxu0 0.0
        %561 = vmatpush1.msra.mxu0 0.0
        %562 = vmatprep.subr.mxu0 0.0
        %563 = vmatpush1.msra.mxu0 0.0
        %564 = vmatprep.subr.mxu0 0.0
        %565 = vmatpush1.msra.mxu0 0.0
        %566 = vmatprep.subr.mxu0 0.0
        %567 = vmatpush1.msra.mxu0 0.0
        %568 = vmatprep.subr.mxu0 0.0
        %569 = vmatpush1.msra.mxu0 0.0
        %570 = vmatprep.subr.mxu0 0.0
        %571 = vmatpush1.msra.mxu0 0.0
        %572 = vmatprep.subr.mxu0 0.0
        %573 = vmatpush1.msra.mxu0 0.0
        %574 = vmatprep.subr.mxu0 0.0
        %575 = vmatpush1.msra.mxu0 0.0
        %576 = vmatprep.subr.mxu0 0.0
        %577 = vmatpush1.msra.mxu0 0.0
        %578 = vmatprep.subr.mxu0 0.0
        %579 = vmatpush1.msra.mxu0 0.0
        %580 = vmatprep.subr.mxu0 0.0
        %581 = vmatpush1.msra.mxu0 0.0
        %582 = vmatprep.subr.mxu0 0.0
        %583 = vmatpush1.msra.mxu0 0.0
        %584 = vmatprep.subr.mxu0 0.0
        %585 = vmatpush1.msra.mxu0 0.0
        %586 = vmatprep.subr.mxu0 0.0
        %587 = vmatpush1.msra.mxu0 0.0
        %588 = vmatprep.subr.mxu0 0.0
        %589 = vmatpush1.msra.mxu0 0.0
        %590 = vmatprep.subr.mxu0 0.0
        %591 = vmatpush1.msra.mxu0 0.0
        %592 = vmatprep.mubr.f32.mxu0 0.0
        %593 = vmatmul.mubr.f32.gmra.mrb[0].mxu0 %v446
        %v594 = vpop.f32.mrb[0].mxu0
        %v595 = vadd.f32 0.0, %v594
        %v596 = vpop.f32.mrb[0].mxu0
        %v597 = vadd.f32 0.0, %v596
        %598 = vmatprep.mubr.f32.mxu0 0.0
        %599 = vmatmul.mubr.f32.gmra.mrb[0].mxu0 %v449
        %v600 = vpop.f32.mrb[0].mxu0
        %v601 = vadd.f32 0.0, %v600
        %v602 = vpop.f32.mrb[0].mxu0
        %v603 = vadd.f32 0.0, %v602
        %604 = vdwg.mxu0
        %v606 = vsel %vm444, %v384, 0
        %v609 = vsel %vm444, %v385, 0
        %611 = vmatprep.subr.mxu0 %v337
        %612 = vmatpush1.msra.mxu0 %v336
        %613 = vmatprep.subr.mxu0 %v358
        %614 = vmatpush1.msra.mxu0 %v357
        %615 = vmatprep.subr.mxu0 %v377
        %616 = vmatpush1.msra.mxu0 %v376
        %617 = vmatprep.subr.mxu0 0.0
        %618 = vmatpush1.msra.mxu0 0.0
        %619 = vmatprep.subr.mxu0 0.0
        %620 = vmatpush1.msra.mxu0 0.0
        %621 = vmatprep.subr.mxu0 0.0
        %622 = vmatpush1.msra.mxu0 0.0
        %623 = vmatprep.subr.mxu0 0.0
        %624 = vmatpush1.msra.mxu0 0.0
        %625 = vmatprep.subr.mxu0 0.0
        %626 = vmatpush1.msra.mxu0 0.0
        %627 = vmatprep.subr.mxu0 0.0
        %628 = vmatpush1.msra.mxu0 0.0
        %629 = vmatprep.subr.mxu0 0.0
        %630 = vmatpush1.msra.mxu0 0.0
        %631 = vmatprep.subr.mxu0 0.0
        %632 = vmatpush1.msra.mxu0 0.0
        %633 = vmatprep.subr.mxu0 0.0
        %634 = vmatpush1.msra.mxu0 0.0
        %635 = vmatprep.subr.mxu0 0.0
        %636 = vmatpush1.msra.mxu0 0.0
        %637 = vmatprep.subr.mxu0 0.0
        %638 = vmatpush1.msra.mxu0 0.0
        %639 = vmatprep.subr.mxu0 0.0
        %640 = vmatpush1.msra.mxu0 0.0
        %641 = vmatprep.subr.mxu0 0.0
        %642 = vmatpush1.msra.mxu0 0.0
        %643 = vmatprep.subr.mxu0 0.0
        %644 = vmatpush1.msra.mxu0 0.0
        %645 = vmatprep.subr.mxu0 0.0
        %646 = vmatpush1.msra.mxu0 0.0
        %647 = vmatprep.subr.mxu0 0.0
        %648 = vmatpush1.msra.mxu0 0.0
        %649 = vmatprep.subr.mxu0 0.0
        %650 = vmatpush1.msra.mxu0 0.0
        %651 = vmatprep.subr.mxu0 0.0
        %652 = vmatpush1.msra.mxu0 0.0
        %653 = vmatprep.subr.mxu0 0.0
        %654 = vmatpush1.msra.mxu0 0.0
        %655 = vmatprep.subr.mxu0 0.0
        %656 = vmatpush1.msra.mxu0 0.0
        %657 = vmatprep.subr.mxu0 0.0
        %658 = vmatpush1.msra.mxu0 0.0
        %659 = vmatprep.subr.mxu0 0.0
        %660 = vmatpush1.msra.mxu0 0.0
        %661 = vmatprep.subr.mxu0 0.0
        %662 = vmatpush1.msra.mxu0 0.0
        %663 = vmatprep.subr.mxu0 0.0
        %664 = vmatpush1.msra.mxu0 0.0
        %665 = vmatprep.subr.mxu0 0.0
        %666 = vmatpush1.msra.mxu0 0.0
        %667 = vmatprep.subr.mxu0 0.0
        %668 = vmatpush1.msra.mxu0 0.0
        %669 = vmatprep.subr.mxu0 0.0
        %670 = vmatpush1.msra.mxu0 0.0
        %671 = vmatprep.subr.mxu0 0.0
        %672 = vmatpush1.msra.mxu0 0.0
        %673 = vmatprep.subr.mxu0 0.0
        %674 = vmatpush1.msra.mxu0 0.0
        %675 = vmatprep.mubr.f32.mxu0 0.0
        %676 = vmatmul.mubr.f32.gmra.mrb[0].mxu0 %v606
        %v677 = vpop.f32.mrb[0].mxu0
        %v678 = vadd.f32 %v518, %v677
        %v679 = vpop.f32.mrb[0].mxu0
        %v680 = vadd.f32 %v520, %v679
        %681 = vmatprep.mubr.f32.mxu0 0.0
        %682 = vmatmul.mubr.f32.gmra.mrb[0].mxu0 %v609
        %v683 = vpop.f32.mrb[0].mxu0
        %v684 = vadd.f32 %v524, %v683
        %v685 = vpop.f32.mrb[0].mxu0
        %v686 = vadd.f32 %v526, %v685
        %687 = vdwg.mxu0
        %688 = vmatprep.subr.mxu0 %v339
        %689 = vmatpush1.msra.mxu0 %v338
        %690 = vmatprep.subr.mxu0 %v360
        %691 = vmatpush1.msra.mxu0 %v359
        %692 = vmatprep.subr.mxu0 %v379
        %693 = vmatpush1.msra.mxu0 %v378
        %694 = vmatprep.subr.mxu0 0.0
        %695 = vmatpush1.msra.mxu0 0.0
        %696 = vmatprep.subr.mxu0 0.0
        %697 = vmatpush1.msra.mxu0 0.0
        %698 = vmatprep.subr.mxu0 0.0
        %699 = vmatpush1.msra.mxu0 0.0
        %700 = vmatprep.subr.mxu0 0.0
        %701 = vmatpush1.msra.mxu0 0.0
        %702 = vmatprep.subr.mxu0 0.0
        %703 = vmatpush1.msra.mxu0 0.0
        %704 = vmatprep.subr.mxu0 0.0
        %705 = vmatpush1.msra.mxu0 0.0
        %706 = vmatprep.subr.mxu0 0.0
        %707 = vmatpush1.msra.mxu0 0.0
        %708 = vmatprep.subr.mxu0 0.0
        %709 = vmatpush1.msra.mxu0 0.0
        %710 = vmatprep.subr.mxu0 0.0
        %711 = vmatpush1.msra.mxu0 0.0
        %712 = vmatprep.subr.mxu0 0.0
        %713 = vmatpush1.msra.mxu0 0.0
        %714 = vmatprep.subr.mxu0 0.0
        %715 = vmatpush1.msra.mxu0 0.0
        %716 = vmatprep.subr.mxu0 0.0
        %717 = vmatpush1.msra.mxu0 0.0
        %718 = vmatprep.subr.mxu0 0.0
        %719 = vmatpush1.msra.mxu0 0.0
        %720 = vmatprep.subr.mxu0 0.0
        %721 = vmatpush1.msra.mxu0 0.0
        %722 = vmatprep.subr.mxu0 0.0
        %723 = vmatpush1.msra.mxu0 0.0
        %724 = vmatprep.subr.mxu0 0.0
        %725 = vmatpush1.msra.mxu0 0.0
        %726 = vmatprep.subr.mxu0 0.0
        %727 = vmatpush1.msra.mxu0 0.0
        %728 = vmatprep.subr.mxu0 0.0
        %729 = vmatpush1.msra.mxu0 0.0
        %730 = vmatprep.subr.mxu0 0.0
        %731 = vmatpush1.msra.mxu0 0.0
        %732 = vmatprep.subr.mxu0 0.0
        %733 = vmatpush1.msra.mxu0 0.0
        %734 = vmatprep.subr.mxu0 0.0
        %735 = vmatpush1.msra.mxu0 0.0
        %736 = vmatprep.subr.mxu0 0.0
        %737 = vmatpush1.msra.mxu0 0.0
        %738 = vmatprep.subr.mxu0 0.0
        %739 = vmatpush1.msra.mxu0 0.0
        %740 = vmatprep.subr.mxu0 0.0
        %741 = vmatpush1.msra.mxu0 0.0
        %742 = vmatprep.subr.mxu0 0.0
        %743 = vmatpush1.msra.mxu0 0.0
        %744 = vmatprep.subr.mxu0 0.0
        %745 = vmatpush1.msra.mxu0 0.0
        %746 = vmatprep.subr.mxu0 0.0
        %747 = vmatpush1.msra.mxu0 0.0
        %748 = vmatprep.subr.mxu0 0.0
        %749 = vmatpush1.msra.mxu0 0.0
        %750 = vmatprep.subr.mxu0 0.0
        %751 = vmatpush1.msra.mxu0 0.0
        %752 = vmatprep.mubr.f32.mxu0 0.0
        %753 = vmatmul.mubr.f32.gmra.mrb[0].mxu0 %v606
        %v754 = vpop.f32.mrb[0].mxu0
        %v755 = vadd.f32 %v595, %v754
        %v756 = vpop.f32.mrb[0].mxu0
        %v757 = vadd.f32 %v597, %v756
        %758 = vmatprep.mubr.f32.mxu0 0.0
        %759 = vmatmul.mubr.f32.gmra.mrb[0].mxu0 %v609
        %v760 = vpop.f32.mrb[0].mxu0
        %v761 = vadd.f32 %v601, %v760
        %v762 = vpop.f32.mrb[0].mxu0
        %v763 = vadd.f32 %v603, %v762
        %764 = vdwg.mxu0
        %s765 = scalar_lea.vmem [#allocation7], 32
        %v766 = vld [vmem:[%s765] sm:$0xff]
        %v767 = vld [vmem:[%s765 + $0x8] sm:$0xff]
        %768 = vrot.lane.b32.xlu0 %v336, 64
        %v769 = vpop.permute.xlu0 %768
        %770 = vrot.lane.b32.xlu0 %v337, 64
        %v771 = vpop.permute.xlu0 %770
        %772 = vrot.lane.b32.xlu0 %v338, 64
        %v773 = vpop.permute.xlu0 %772
        %774 = vrot.lane.b32.xlu0 %v339, 64
        %v775 = vpop.permute.xlu0 %774
        %776 = vrot.lane.b32.xlu0 %v340, 64
        %v777 = vpop.permute.xlu0 %776
        %778 = vrot.lane.b32.xlu0 %v357, 64
        %v779 = vpop.permute.xlu0 %778
        %780 = vrot.lane.b32.xlu0 %v358, 64
        %v781 = vpop.permute.xlu0 %780
        %782 = vrot.lane.b32.xlu0 %v359, 64
        %v783 = vpop.permute.xlu0 %782
        %784 = vrot.lane.b32.xlu0 %v360, 64
        %v785 = vpop.permute.xlu0 %784
        %786 = vrot.lane.b32.xlu0 %v355, 64
        %v787 = vpop.permute.xlu0 %786
        %788 = vrot.lane.b32.xlu0 %v376, 64
        %v789 = vpop.permute.xlu0 %788
        %790 = vrot.lane.b32.xlu0 %v377, 64
        %v791 = vpop.permute.xlu0 %790
        %792 = vrot.lane.b32.xlu0 %v378, 64
        %v793 = vpop.permute.xlu0 %792
        %794 = vrot.lane.b32.xlu0 %v379, 64
        %v795 = vpop.permute.xlu0 %794
        %796 = vrot.lane.b32.xlu0 %v374, 64
        %v797 = vpop.permute.xlu0 %796
        %vm798 = vcmask 523264
        %v799 = vsel %vm798, %v769, %v771
        %v800 = vsel %vm798, %v771, %v773
        %v801 = vsel %vm798, %v773, %v775
        %v802 = vsel %vm798, %v775, %v777
        %v803 = vsel %vm798, %v779, %v781
        %v804 = vsel %vm798, %v781, %v783
        %v805 = vsel %vm798, %v783, %v785
        %v806 = vsel %vm798, %v785, %v787
        %v807 = vsel %vm798, %v789, %v791
        %v808 = vsel %vm798, %v791, %v793
        %v809 = vsel %vm798, %v793, %v795
        %v810 = vsel %vm798, %v795, %v797
        %v824 = vsel %vm444, %v766, 0
        %v827 = vsel %vm444, %v767, 0
        %829 = vmatprep.subr.mxu0 %v800
        %830 = vmatpush1.msra.mxu0 %v799
        %831 = vmatprep.subr.mxu0 %v804
        %832 = vmatpush1.msra.mxu0 %v803
        %833 = vmatprep.subr.mxu0 %v808
        %834 = vmatpush1.msra.mxu0 %v807
        %835 = vmatprep.subr.mxu0 0.0
        %836 = vmatpush1.msra.mxu0 0.0
        %837 = vmatprep.subr.mxu0 0.0
        %838 = vmatpush1.msra.mxu0 0.0
        %839 = vmatprep.subr.mxu0 0.0
        %840 = vmatpush1.msra.mxu0 0.0
        %841 = vmatprep.subr.mxu0 0.0
        %842 = vmatpush1.msra.mxu0 0.0
        %843 = vmatprep.subr.mxu0 0.0
        %844 = vmatpush1.msra.mxu0 0.0
        %845 = vmatprep.subr.mxu0 0.0
        %846 = vmatpush1.msra.mxu0 0.0
        %847 = vmatprep.subr.mxu0 0.0
        %848 = vmatpush1.msra.mxu0 0.0
        %849 = vmatprep.subr.mxu0 0.0
        %850 = vmatpush1.msra.mxu0 0.0
        %851 = vmatprep.subr.mxu0 0.0
        %852 = vmatpush1.msra.mxu0 0.0
        %853 = vmatprep.subr.mxu0 0.0
        %854 = vmatpush1.msra.mxu0 0.0
        %855 = vmatprep.subr.mxu0 0.0
        %856 = vmatpush1.msra.mxu0 0.0
        %857 = vmatprep.subr.mxu0 0.0
        %858 = vmatpush1.msra.mxu0 0.0
        %859 = vmatprep.subr.mxu0 0.0
        %860 = vmatpush1.msra.mxu0 0.0
        %861 = vmatprep.subr.mxu0 0.0
        %862 = vmatpush1.msra.mxu0 0.0
        %863 = vmatprep.subr.mxu0 0.0
        %864 = vmatpush1.msra.mxu0 0.0
        %865 = vmatprep.subr.mxu0 0.0
        %866 = vmatpush1.msra.mxu0 0.0
        %867 = vmatprep.subr.mxu0 0.0
        %868 = vmatpush1.msra.mxu0 0.0
        %869 = vmatprep.subr.mxu0 0.0
        %870 = vmatpush1.msra.mxu0 0.0
        %871 = vmatprep.subr.mxu0 0.0
        %872 = vmatpush1.msra.mxu0 0.0
        %873 = vmatprep.subr.mxu0 0.0
        %874 = vmatpush1.msra.mxu0 0.0
        %875 = vmatprep.subr.mxu0 0.0
        %876 = vmatpush1.msra.mxu0 0.0
        %877 = vmatprep.subr.mxu0 0.0
        %878 = vmatpush1.msra.mxu0 0.0
        %879 = vmatprep.subr.mxu0 0.0
        %880 = vmatpush1.msra.mxu0 0.0
        %881 = vmatprep.subr.mxu0 0.0
        %882 = vmatpush1.msra.mxu0 0.0
        %883 = vmatprep.subr.mxu0 0.0
        %884 = vmatpush1.msra.mxu0 0.0
        %885 = vmatprep.subr.mxu0 0.0
        %886 = vmatpush1.msra.mxu0 0.0
        %887 = vmatprep.subr.mxu0 0.0
        %888 = vmatpush1.msra.mxu0 0.0
        %889 = vmatprep.subr.mxu0 0.0
        %890 = vmatpush1.msra.mxu0 0.0
        %891 = vmatprep.subr.mxu0 0.0
        %892 = vmatpush1.msra.mxu0 0.0
        %893 = vmatprep.mubr.f32.mxu0 0.0
        %894 = vmatmul.mubr.f32.gmra.mrb[0].mxu0 %v824
        %v895 = vpop.f32.mrb[0].mxu0
        %v896 = vadd.f32 0.0, %v895
        %v897 = vpop.f32.mrb[0].mxu0
        %v898 = vadd.f32 0.0, %v897
        %899 = vmatprep.mubr.f32.mxu0 0.0
        %900 = vmatmul.mubr.f32.gmra.mrb[0].mxu0 %v827
        %v901 = vpop.f32.mrb[0].mxu0
        %v902 = vadd.f32 0.0, %v901
        %v903 = vpop.f32.mrb[0].mxu0
        %v904 = vadd.f32 0.0, %v903
        %905 = vdwg.mxu0
        %906 = vmatprep.subr.mxu0 %v802
        %907 = vmatpush1.msra.mxu0 %v801
        %908 = vmatprep.subr.mxu0 %v806
        %909 = vmatpush1.msra.mxu0 %v805
        %910 = vmatprep.subr.mxu0 %v810
        %911 = vmatpush1.msra.mxu0 %v809
        %912 = vmatprep.subr.mxu0 0.0
        %913 = vmatpush1.msra.mxu0 0.0
        %914 = vmatprep.subr.mxu0 0.0
        %915 = vmatpush1.msra.mxu0 0.0
        %916 = vmatprep.subr.mxu0 0.0
        %917 = vmatpush1.msra.mxu0 0.0
        %918 = vmatprep.subr.mxu0 0.0
        %919 = vmatpush1.msra.mxu0 0.0
        %920 = vmatprep.subr.mxu0 0.0
        %921 = vmatpush1.msra.mxu0 0.0
        %922 = vmatprep.subr.mxu0 0.0
        %923 = vmatpush1.msra.mxu0 0.0
        %924 = vmatprep.subr.mxu0 0.0
        %925 = vmatpush1.msra.mxu0 0.0
        %926 = vmatprep.subr.mxu0 0.0
        %927 = vmatpush1.msra.mxu0 0.0
        %928 = vmatprep.subr.mxu0 0.0
        %929 = vmatpush1.msra.mxu0 0.0
        %930 = vmatprep.subr.mxu0 0.0
        %931 = vmatpush1.msra.mxu0 0.0
        %932 = vmatprep.subr.mxu0 0.0
        %933 = vmatpush1.msra.mxu0 0.0
        %934 = vmatprep.subr.mxu0 0.0
        %935 = vmatpush1.msra.mxu0 0.0
        %936 = vmatprep.subr.mxu0 0.0
        %937 = vmatpush1.msra.mxu0 0.0
        %938 = vmatprep.subr.mxu0 0.0
        %939 = vmatpush1.msra.mxu0 0.0
        %940 = vmatprep.subr.mxu0 0.0
        %941 = vmatpush1.msra.mxu0 0.0
        %942 = vmatprep.subr.mxu0 0.0
        %943 = vmatpush1.msra.mxu0 0.0
        %944 = vmatprep.subr.mxu0 0.0
        %945 = vmatpush1.msra.mxu0 0.0
        %946 = vmatprep.subr.mxu0 0.0
        %947 = vmatpush1.msra.mxu0 0.0
        %948 = vmatprep.subr.mxu0 0.0
        %949 = vmatpush1.msra.mxu0 0.0
        %950 = vmatprep.subr.mxu0 0.0
        %951 = vmatpush1.msra.mxu0 0.0
        %952 = vmatprep.subr.mxu0 0.0
        %953 = vmatpush1.msra.mxu0 0.0
        %954 = vmatprep.subr.mxu0 0.0
        %955 = vmatpush1.msra.mxu0 0.0
        %956 = vmatprep.subr.mxu0 0.0
        %957 = vmatpush1.msra.mxu0 0.0
        %958 = vmatprep.subr.mxu0 0.0
        %959 = vmatpush1.msra.mxu0 0.0
        %960 = vmatprep.subr.mxu0 0.0
        %961 = vmatpush1.msra.mxu0 0.0
        %962 = vmatprep.subr.mxu0 0.0
        %963 = vmatpush1.msra.mxu0 0.0
        %964 = vmatprep.subr.mxu0 0.0
        %965 = vmatpush1.msra.mxu0 0.0
        %966 = vmatprep.subr.mxu0 0.0
        %967 = vmatpush1.msra.mxu0 0.0
        %968 = vmatprep.subr.mxu0 0.0
        %969 = vmatpush1.msra.mxu0 0.0
        %970 = vmatprep.mubr.f32.mxu0 0.0
        %971 = vmatmul.mubr.f32.gmra.mrb[0].mxu0 %v824
        %v972 = vpop.f32.mrb[0].mxu0
        %v973 = vadd.f32 0.0, %v972
        %v974 = vpop.f32.mrb[0].mxu0
        %v975 = vadd.f32 0.0, %v974
        %976 = vmatprep.mubr.f32.mxu0 0.0
        %977 = vmatmul.mubr.f32.gmra.mrb[0].mxu0 %v827
        %v978 = vpop.f32.mrb[0].mxu0
        %v979 = vadd.f32 0.0, %v978
        %v980 = vpop.f32.mrb[0].mxu0
        %v981 = vadd.f32 0.0, %v980
        %982 = vdwg.mxu0
        %v983 = vadd.f32 %v678, %v896
        %v984 = vadd.f32 %v680, %v898
        %v985 = vadd.f32 %v755, %v973
        %v986 = vadd.f32 %v757, %v975
        %v987 = vadd.f32 %v684, %v902
        %v988 = vadd.f32 %v686, %v904
        %v989 = vadd.f32 %v761, %v979
        %v990 = vadd.f32 %v763, %v981
        %v991 = vld [vmem:[%s3] sm:$0xff]
        %v992 = vld [vmem:[%s3 + $0x8] sm:$0xff]
        %994 = vset.pattern.permute.xlu0 0
        %995 = vperm.xlu0 %994, %v991
        %v996 = vpop.permute.xlu0 %995
        %999 = vset.pattern.permute.xlu0 0
        %1000 = vperm.xlu0 %999, %v992
        %v1001 = vpop.permute.xlu0 %1000
        %v1003 = vadd.f32 %v983, %v996
        %v1004 = vadd.f32 %v984, %v996
        %v1005 = vadd.f32 %v985, %v996
        %v1006 = vadd.f32 %v986, %v996
        %v1007 = vadd.f32 %v987, %v1001
        %v1008 = vadd.f32 %v988, %v1001
        %v1009 = vadd.f32 %v989, %v1001
        %v1010 = vadd.f32 %v990, %v1001
        %v1011 = vmax.f32 %v1003, 0.0
        %v1012 = vmax.f32 %v1004, 0.0
        %v1013 = vmax.f32 %v1005, 0.0
        %v1014 = vmax.f32 %v1006, 0.0
        %v1015 = vmax.f32 %v1007, 0.0
        %v1016 = vmax.f32 %v1008, 0.0
        %v1017 = vmax.f32 %v1009, 0.0
        %v1018 = vmax.f32 %v1010, 0.0
        %v1019 = vld [vmem:[%s4] sm:$0xff]
        %vm1020 = vcmask 130048
        %v1022 = vsel %vm1020, %v1019, 0
        %1024 = vmatprep.subr.mxu0 %v1012
        %1025 = vmatpush1.msra.mxu0 %v1011
        %1026 = vmatprep.subr.mxu0 %v1016
        %1027 = vmatpush1.msra.mxu0 %v1015
        %1028 = vmatprep.subr.mxu0 0.0
        %1029 = vmatpush1.msra.mxu0 0.0
        %1030 = vmatprep.subr.mxu0 0.0
        %1031 = vmatpush1.msra.mxu0 0.0
        %1032 = vmatprep.subr.mxu0 0.0
        %1033 = vmatpush1.msra.mxu0 0.0
        %1034 = vmatprep.subr.mxu0 0.0
        %1035 = vmatpush1.msra.mxu0 0.0
        %1036 = vmatprep.subr.mxu0 0.0
        %1037 = vmatpush1.msra.mxu0 0.0
        %1038 = vmatprep.subr.mxu0 0.0
        %1039 = vmatpush1.msra.mxu0 0.0
        %1040 = vmatprep.subr.mxu0 0.0
        %1041 = vmatpush1.msra.mxu0 0.0
        %1042 = vmatprep.subr.mxu0 0.0
        %1043 = vmatpush1.msra.mxu0 0.0
        %1044 = vmatprep.subr.mxu0 0.0
        %1045 = vmatpush1.msra.mxu0 0.0
        %1046 = vmatprep.subr.mxu0 0.0
        %1047 = vmatpush1.msra.mxu0 0.0
        %1048 = vmatprep.subr.mxu0 0.0
        %1049 = vmatpush1.msra.mxu0 0.0
        %1050 = vmatprep.subr.mxu0 0.0
        %1051 = vmatpush1.msra.mxu0 0.0
        %1052 = vmatprep.subr.mxu0 0.0
        %1053 = vmatpush1.msra.mxu0 0.0
        %1054 = vmatprep.subr.mxu0 0.0
        %1055 = vmatpush1.msra.mxu0 0.0
        %1056 = vmatprep.subr.mxu0 0.0
        %1057 = vmatpush1.msra.mxu0 0.0
        %1058 = vmatprep.subr.mxu0 0.0
        %1059 = vmatpush1.msra.mxu0 0.0
        %1060 = vmatprep.subr.mxu0 0.0
        %1061 = vmatpush1.msra.mxu0 0.0
        %1062 = vmatprep.subr.mxu0 0.0
        %1063 = vmatpush1.msra.mxu0 0.0
        %1064 = vmatprep.subr.mxu0 0.0
        %1065 = vmatpush1.msra.mxu0 0.0
        %1066 = vmatprep.subr.mxu0 0.0
        %1067 = vmatpush1.msra.mxu0 0.0
        %1068 = vmatprep.subr.mxu0 0.0
        %1069 = vmatpush1.msra.mxu0 0.0
        %1070 = vmatprep.subr.mxu0 0.0
        %1071 = vmatpush1.msra.mxu0 0.0
        %1072 = vmatprep.subr.mxu0 0.0
        %1073 = vmatpush1.msra.mxu0 0.0
        %1074 = vmatprep.subr.mxu0 0.0
        %1075 = vmatpush1.msra.mxu0 0.0
        %1076 = vmatprep.subr.mxu0 0.0
        %1077 = vmatpush1.msra.mxu0 0.0
        %1078 = vmatprep.subr.mxu0 0.0
        %1079 = vmatpush1.msra.mxu0 0.0
        %1080 = vmatprep.subr.mxu0 0.0
        %1081 = vmatpush1.msra.mxu0 0.0
        %1082 = vmatprep.subr.mxu0 0.0
        %1083 = vmatpush1.msra.mxu0 0.0
        %1084 = vmatprep.subr.mxu0 0.0
        %1085 = vmatpush1.msra.mxu0 0.0
        %1086 = vmatprep.subr.mxu0 0.0
        %1087 = vmatpush1.msra.mxu0 0.0
        %1088 = vmatprep.mubr.f32.mxu0 0.0
        %1089 = vmatmul.mubr.f32.gmra.mrb[0].mxu0 %v1022
        %v1090 = vpop.f32.mrb[0].mxu0
        %v1091 = vadd.f32 0.0, %v1090
        %v1092 = vpop.f32.mrb[0].mxu0
        %v1093 = vadd.f32 0.0, %v1092
        %1094 = vdwg.mxu0
        %1095 = vmatprep.subr.mxu0 %v1014
        %1096 = vmatpush1.msra.mxu0 %v1013
        %1097 = vmatprep.subr.mxu0 %v1018
        %1098 = vmatpush1.msra.mxu0 %v1017
        %1099 = vmatprep.subr.mxu0 0.0
        %1100 = vmatpush1.msra.mxu0 0.0
        %1101 = vmatprep.subr.mxu0 0.0
        %1102 = vmatpush1.msra.mxu0 0.0
        %1103 = vmatprep.subr.mxu0 0.0
        %1104 = vmatpush1.msra.mxu0 0.0
        %1105 = vmatprep.subr.mxu0 0.0
        %1106 = vmatpush1.msra.mxu0 0.0
        %1107 = vmatprep.subr.mxu0 0.0
        %1108 = vmatpush1.msra.mxu0 0.0
        %1109 = vmatprep.subr.mxu0 0.0
        %1110 = vmatpush1.msra.mxu0 0.0
        %1111 = vmatprep.subr.mxu0 0.0
        %1112 = vmatpush1.msra.mxu0 0.0
        %1113 = vmatprep.subr.mxu0 0.0
        %1114 = vmatpush1.msra.mxu0 0.0
        %1115 = vmatprep.subr.mxu0 0.0
        %1116 = vmatpush1.msra.mxu0 0.0
        %1117 = vmatprep.subr.mxu0 0.0
        %1118 = vmatpush1.msra.mxu0 0.0
        %1119 = vmatprep.subr.mxu0 0.0
        %1120 = vmatpush1.msra.mxu0 0.0
        %1121 = vmatprep.subr.mxu0 0.0
        %1122 = vmatpush1.msra.mxu0 0.0
        %1123 = vmatprep.subr.mxu0 0.0
        %1124 = vmatpush1.msra.mxu0 0.0
        %1125 = vmatprep.subr.mxu0 0.0
        %1126 = vmatpush1.msra.mxu0 0.0
        %1127 = vmatprep.subr.mxu0 0.0
        %1128 = vmatpush1.msra.mxu0 0.0
        %1129 = vmatprep.subr.mxu0 0.0
        %1130 = vmatpush1.msra.mxu0 0.0
        %1131 = vmatprep.subr.mxu0 0.0
        %1132 = vmatpush1.msra.mxu0 0.0
        %1133 = vmatprep.subr.mxu0 0.0
        %1134 = vmatpush1.msra.mxu0 0.0
        %1135 = vmatprep.subr.mxu0 0.0
        %1136 = vmatpush1.msra.mxu0 0.0
        %1137 = vmatprep.subr.mxu0 0.0
        %1138 = vmatpush1.msra.mxu0 0.0
        %1139 = vmatprep.subr.mxu0 0.0
        %1140 = vmatpush1.msra.mxu0 0.0
        %1141 = vmatprep.subr.mxu0 0.0
        %1142 = vmatpush1.msra.mxu0 0.0
        %1143 = vmatprep.subr.mxu0 0.0
        %1144 = vmatpush1.msra.mxu0 0.0
        %1145 = vmatprep.subr.mxu0 0.0
        %1146 = vmatpush1.msra.mxu0 0.0
        %1147 = vmatprep.subr.mxu0 0.0
        %1148 = vmatpush1.msra.mxu0 0.0
        %1149 = vmatprep.subr.mxu0 0.0
        %1150 = vmatpush1.msra.mxu0 0.0
        %1151 = vmatprep.subr.mxu0 0.0
        %1152 = vmatpush1.msra.mxu0 0.0
        %1153 = vmatprep.subr.mxu0 0.0
        %1154 = vmatpush1.msra.mxu0 0.0
        %1155 = vmatprep.subr.mxu0 0.0
        %1156 = vmatpush1.msra.mxu0 0.0
        %1157 = vmatprep.subr.mxu0 0.0
        %1158 = vmatpush1.msra.mxu0 0.0
        %1159 = vmatprep.mubr.f32.mxu0 0.0
        %1160 = vmatmul.mubr.f32.gmra.mrb[0].mxu0 %v1022
        %v1161 = vpop.f32.mrb[0].mxu0
        %v1162 = vadd.f32 0.0, %v1161
        %v1163 = vpop.f32.mrb[0].mxu0
        %v1164 = vadd.f32 0.0, %v1163
        %1165 = vdwg.mxu0
        %1166 = vst [vmem:[%s326] sm:$0xff] %v1091
        %1167 = vst [vmem:[%s326 + $0x8] sm:$0xff] %v1093
        %1168 = vst [vmem:[%s326 + $0x10] sm:$0xff] %v1162
        %1169 = vst [vmem:[%s326 + $0x18] sm:$0xff] %v1164
        %s1170 = sand.u32 %s170, 1
        %s1171 = scalar_lea.sflag [#allocation4], %s1170
        %s1172 = sand.u32 %s170, 1
        %s1173 = smul.addr %s1172, 32
        %s1174 = scalar_lea.vmem [#allocation8], %s1173
        // Predicated region
        $region53: #{tpu_custom_call.1} parent=39 // pred_check
          %p1175 = pneg %p180
        $region54: #{tpu_custom_call.1} parent=39 // pred_check_branch
          %1177 = sbr.rel (%p1175) target = $region56
        $region55: #{tpu_custom_call.1} parent=39 // pred_region
          %s1178 = smul.u32 4, %s30
          %s1180 = ssub.s32 512, 512
          %1181 = vsyncadd %s1171, %s1180
          %s1182 = smul.addr %s29, 4
          %s1183 = sadd.s32 %s1178, %s1182
          %s1184 = smul.addr %s1183, 128
          %s1185 = scalar_lea.hbm %s5, %s1184
          %s1187 = sshll.u32 %s1174, 4
          %s1188 = int_to_ptr.vmem [resolvable:$true] %s1187
          %1190 = dma.vmem_to_hbm [thread:$0]  %s1188, 512, %s1185, %s1171
        $region56: #{tpu_custom_call.1} parent=39 // pred_fallthru
          _
      $region40: #{tpu_custom_call.1} parent=5 // pred_fallthru
        _
      %p1191 = scmp.le.s32.totalorder 2, %s20
      // Predicated region
      $region57: #{tpu_custom_call.1} parent=5 // pred_check
        %p1192 = pneg %p1191
      $region58: #{tpu_custom_call.1} parent=5 // pred_check_branch
        %1194 = sbr.rel (%p1192) target = $region60
      $region59: #{tpu_custom_call.1} parent=5 // pred_region
        %s1195 = ssub.s32 %s20, 2
        // Predicated region
        $region61: #{tpu_custom_call.1} parent=59 // pred_check
          %p1196 = pneg %p186
        $region62: #{tpu_custom_call.1} parent=59 // pred_check_branch
          %1198 = sbr.rel (%p1196) target = $region64
        $region63: #{tpu_custom_call.1} parent=59 // pred_region
          %s1199 = sand.u32 %s171, 1
          %s1200 = scalar_lea.sflag [#allocation4], %s1199
          %s1201 = sand.u32 %s171, 1
          %s1202 = smul.addr %s1201, 32
          %s1203 = scalar_lea.vmem [#allocation8], %s1202
          %1204 = dma.done %s1200, 512
        $region64: #{tpu_custom_call.1} parent=59 // pred_fallthru
          _
      $region60: #{tpu_custom_call.1} parent=5 // pred_fallthru
        _
    $region6: #{tpu_custom_call.1} parent=1 // loop_footer
      %s24 = sadd.s32 1, %s20
    $region7: #{tpu_custom_call.1} parent=1 // loop_footer_branch
      %19 = sbr.rel target = $region3
    $region8: #{tpu_custom_call.1} parent=1 // loop_exit
      _
    %1205 = vsyncpa [#allocation3], 1
    %s1206 = scalar_lea.sflag [#allocation3], 1
    %1207 = vsyncpa %s1206, 1
    %1208 = vsyncpa [#allocation6], 1
    %s1209 = scalar_lea.sflag [#allocation6], 1
    %1210 = vsyncpa %s1209, 1
    %1211 = vsyncpa [#allocation4], 1
    %s1212 = scalar_lea.sflag [#allocation4], 1
    %1213 = vsyncpa %s1212, 1

</llo_original>
